<compile_context>
chip_gen: v5e
topology: v5e:2x2
jax: 0.10.0
libtpu: 0.0.40
codegen_flags: <defaults>
</compile_context>

<pallas_src>
import jax
import jax.numpy as jnp
from jax import lax
from jax.experimental import pallas as pl
from jax.experimental.pallas import tpu as pltpu

N_CARDS = 128          # rows in the synthetic card table (one 128-lane vreg)
K_OUT = 10             # LIMIT 10
LIVING_ROOM = 1        # integer code standing in for img_space == '거실'

# Single-vreg design: keys pack the lane index into the low 7 bits for
# uniqueness, so the table must be exactly one 128-lane row.
assert N_CARDS == 128, "table must be exactly 128 rows (one vreg)"

INT32_MIN = int(jnp.iinfo(jnp.int32).min)


def select_kernel(seed_ref, tbl_ref, out_ref):
    # seed_ref: SMEM (1,)          int32   -- RNG seed ("ORDER BY random()")
    # tbl_ref:  VMEM (8, N_CARDS)  int32   -- row0=card_id, row1=img_space,
    #                                         row2=is_human, rows 3..7 pad
    # out_ref:  VMEM (1, N_CARDS)  int32   -- lanes 0..9 hold the selection
    lane = lax.broadcasted_iota(jnp.int32, (1, N_CARDS), 1)

    card = tbl_ref[0:1, :]    # (1, N_CARDS) card_id
    space = tbl_ref[1:2, :]   # (1, N_CARDS) img_space code
    human = tbl_ref[2:3, :]   # (1, N_CARDS) is_human flag

    # --- ORDER BY func.random(): per-row pseudo-random bits via an integer
    #     hash of (seed, lane).  Pure jnp bit ops (portable, deterministic).
    x = (lane.astype(jnp.uint32) * jnp.uint32(0x9E3779B1)
         + seed_ref[0].astype(jnp.uint32) * jnp.uint32(0x85EBCA77))
    x = x ^ (x >> jnp.uint32(16))
    x = x * jnp.uint32(0x7FEB352D)
    x = x ^ (x >> jnp.uint32(15))
    x = x * jnp.uint32(0x846CA68B)
    x = x ^ (x >> jnp.uint32(16))
    rnd24 = (x >> jnp.uint32(8)).astype(jnp.int32)   # 24 random bits, >= 0

    # --- WHERE img_space == '거실' AND is_human == 0 -------------------------
    mask = (space == LIVING_ROOM) & (human == 0)

    # Packed key: high bits = random, low 7 bits = lane (unique per valid row).
    # Invalid rows -> -1 (strictly below every valid key, which is >= 0).
    keys = jnp.where(mask, (rnd24 << 7) | lane, jnp.int32(-1))

    # --- LIMIT 10: fully unrolled, fully vector-side.
    # Critical chain per pick: XLU max (keepdims) -> VPU compare -> VPU select.
    # The card_id extraction (masked select + second reduce) and the output
    # accumulation are off that chain and overlap the next pick's reduce.
    out_vec = jnp.full((1, N_CARDS), -1, dtype=jnp.int32)
    for i in range(K_OUT):
        winner = jnp.max(keys, axis=1, keepdims=True)          # (1,1) int32
        hit = keys == winner                                   # winning lane
        # card_id of the winning lane (exactly one lane matches when valid)
        cid = jnp.max(jnp.where(hit, card, jnp.int32(INT32_MIN)),
                      axis=1, keepdims=True)
        # Fewer than 10 valid rows -> winner is the -1 sentinel -> emit -1.
        cid = jnp.where(winner >= 0, cid, jnp.int32(-1))
        out_vec = jnp.where(lane == i, cid, out_vec)           # slot i
        keys = jnp.where(hit, jnp.int32(-1), keys)             # drop chosen row

    out_ref[...] = out_vec   # one unmasked lane-dense vector store


@jax.jit
def signup_forward(seed, card_table,
                   card_id=None, space=None, size=None, family=None):
    # card_id / space / size / family mirror Signup_Model.forward's signature;
    # the original query ignores them, so they are ignored here too.
    out = pl.pallas_call(
        select_kernel,
        out_shape=jax.ShapeDtypeStruct((1, N_CARDS), jnp.int32),
        in_specs=[
            pl.BlockSpec(memory_space=pltpu.MemorySpace.SMEM),   # seed
            pl.BlockSpec(memory_space=pltpu.MemorySpace.VMEM),   # merged table
        ],
        out_specs=pl.BlockSpec(memory_space=pltpu.MemorySpace.VMEM),
    )(seed, card_table)
    return out[0, :K_OUT]    # lane-dense output -> the 10 selected card_ids


if __name__ == "__main__":
    key = jax.random.PRNGKey(0)
    k1, k2, k3 = jax.random.split(key, 3)

    # Deterministic synthetic card table.
    card_id_tbl = jax.random.permutation(
        k1, jnp.arange(1000, 1000 + N_CARDS, dtype=jnp.int32))        # (128,)
    img_space_tbl = jax.random.randint(k2, (N_CARDS,), 0, 3, dtype=jnp.int32)
    is_human_tbl = jax.random.randint(k3, (N_CARDS,), 0, 2, dtype=jnp.int32)
    # Guarantee at least 10 rows satisfy the WHERE clause.
    img_space_tbl = img_space_tbl.at[:20].set(LIVING_ROOM)
    is_human_tbl = is_human_tbl.at[:20].set(0)

    # Merge the three columns into one (8,128) int32 array -> single input DMA.
    card_table = jnp.zeros((8, N_CARDS), dtype=jnp.int32)
    card_table = card_table.at[0].set(card_id_tbl)
    card_table = card_table.at[1].set(img_space_tbl)
    card_table = card_table.at[2].set(is_human_tbl)

    seed = jnp.array([42], dtype=jnp.int32)

    # The module's forward-args (ignored by the original query).
    dummy_card_id, dummy_space, dummy_size, dummy_family = 7, 1, 2, 3

    selected = signup_forward(seed, card_table,
                              dummy_card_id, dummy_space, dummy_size,
                              dummy_family)
    selected = jax.block_until_ready(selected)

    # Sanity: every returned id must come from the filtered set, and all 10
    # must be distinct (random sample without replacement).
    mask_host = [(int(s) == LIVING_ROOM) and (int(h) == 0)
                 for s, h in zip(img_space_tbl.tolist(), is_human_tbl.tolist())]
    valid_ids = set(int(c) for c, m in zip(card_id_tbl.tolist(), mask_host) if m)
    sel_list = [int(v) for v in selected.tolist()]
    assert len(sel_list) == K_OUT
    assert len(set(sel_list)) == K_OUT
    assert all(v in valid_ids for v in sel_list)

    print("KERNEL_OK")
</pallas_src>

<mosaic_0001>
module attributes {stable_mosaic.version = 11 : i64} {
  func.func @select_kernel(%arg0: memref<1xi32, #tpu.memory_space<smem>>, %arg1: memref<8x128xi32, #tpu.memory_space<vmem>>, %arg2: memref<1x128xi32, #tpu.memory_space<vmem>>) attributes {dimension_semantics = [], scalar_prefetch = 0 : i64, scratch_operands = 0 : i64, tpu.core_type = #tpu.core_type<tc>} {
    %0 = tpu.iota {dimensions = array<i32: 1>} : vector<1x128xi32>
    %c0 = arith.constant 0 : index
    %c0_0 = arith.constant 0 : index
    %1 = vector.load %arg1[%c0, %c0_0] : memref<8x128xi32, #tpu.memory_space<vmem>>, vector<1x128xi32>
    %c1 = arith.constant 1 : index
    %c0_1 = arith.constant 0 : index
    %2 = vector.load %arg1[%c1, %c0_1] : memref<8x128xi32, #tpu.memory_space<vmem>>, vector<1x128xi32>
    %c2 = arith.constant 2 : index
    %c0_2 = arith.constant 0 : index
    %3 = vector.load %arg1[%c2, %c0_2] : memref<8x128xi32, #tpu.memory_space<vmem>>, vector<1x128xi32>
    %c-1640531535_i32 = arith.constant -1640531535 : i32
    %4 = vector.broadcast %c-1640531535_i32 : i32 to vector<1x128xi32>
    %5 = arith.muli %0, %4 : vector<1x128xi32>
    %c0_3 = arith.constant 0 : index
    %6 = memref.load %arg0[%c0_3] : memref<1xi32, #tpu.memory_space<smem>>
    %c-2048144777_i32 = arith.constant -2048144777 : i32
    %7 = arith.muli %6, %c-2048144777_i32 : i32
    %8 = vector.broadcast %7 : i32 to vector<1x128xi32>
    %9 = arith.addi %5, %8 : vector<1x128xi32>
    %c16_i32 = arith.constant 16 : i32
    %10 = vector.broadcast %c16_i32 : i32 to vector<1x128xi32>
    %11 = arith.shrui %9, %10 : vector<1x128xi32>
    %12 = arith.xori %9, %11 : vector<1x128xi32>
    %c2146121005_i32 = arith.constant 2146121005 : i32
    %13 = vector.broadcast %c2146121005_i32 : i32 to vector<1x128xi32>
    %14 = arith.muli %12, %13 : vector<1x128xi32>
    %c15_i32 = arith.constant 15 : i32
    %15 = vector.broadcast %c15_i32 : i32 to vector<1x128xi32>
    %16 = arith.shrui %14, %15 : vector<1x128xi32>
    %17 = arith.xori %14, %16 : vector<1x128xi32>
    %c-2073254261_i32 = arith.constant -2073254261 : i32
    %18 = vector.broadcast %c-2073254261_i32 : i32 to vector<1x128xi32>
    %19 = arith.muli %17, %18 : vector<1x128xi32>
    %c16_i32_4 = arith.constant 16 : i32
    %20 = vector.broadcast %c16_i32_4 : i32 to vector<1x128xi32>
    %21 = arith.shrui %19, %20 : vector<1x128xi32>
    %22 = arith.xori %19, %21 : vector<1x128xi32>
    %c8_i32 = arith.constant 8 : i32
    %23 = vector.broadcast %c8_i32 : i32 to vector<1x128xi32>
    %24 = arith.shrui %22, %23 : vector<1x128xi32>
    %c1_i32 = arith.constant 1 : i32
    %25 = vector.broadcast %c1_i32 : i32 to vector<1x128xi32>
    %26 = arith.cmpi eq, %2, %25 : vector<1x128xi32>
    %c0_i32 = arith.constant 0 : i32
    %27 = vector.broadcast %c0_i32 : i32 to vector<1x128xi32>
    %28 = arith.cmpi eq, %3, %27 : vector<1x128xi32>
    %29 = arith.andi %26, %28 : vector<1x128xi1>
    %c7_i32 = arith.constant 7 : i32
    %30 = vector.broadcast %c7_i32 : i32 to vector<1x128xi32>
    %31 = arith.shli %24, %30 : vector<1x128xi32>
    %32 = arith.ori %31, %0 : vector<1x128xi32>
    %c-1_i32 = arith.constant -1 : i32
    %33 = vector.broadcast %c-1_i32 : i32 to vector<1x128xi32>
    %34 = arith.select %29, %32, %33 : vector<1x128xi1>, vector<1x128xi32>
    %c-1_i32_5 = arith.constant -1 : i32
    %35 = vector.broadcast %c-1_i32_5 : i32 to vector<1x128xi32>
    %cst = arith.constant dense<-2147483648> : vector<1xi32>
    %36 = vector.multi_reduction <maxsi>, %34, %cst [1] : vector<1x128xi32> to vector<1xi32>
    %37 = vector.shape_cast %36 : vector<1xi32> to vector<1x1xi32>
    %38 = vector.broadcast %37 : vector<1x1xi32> to vector<1x128xi32>
    %39 = arith.cmpi eq, %34, %38 : vector<1x128xi32>
    %c-2147483648_i32 = arith.constant -2147483648 : i32
    %40 = vector.broadcast %c-2147483648_i32 : i32 to vector<1x128xi32>
    %41 = arith.select %39, %1, %40 : vector<1x128xi1>, vector<1x128xi32>
    %cst_6 = arith.constant dense<-2147483648> : vector<1xi32>
    %42 = vector.multi_reduction <maxsi>, %41, %cst_6 [1] : vector<1x128xi32> to vector<1xi32>
    %43 = vector.shape_cast %42 : vector<1xi32> to vector<1x1xi32>
    %c0_i32_7 = arith.constant 0 : i32
    %44 = vector.broadcast %c0_i32_7 : i32 to vector<1x1xi32>
    %45 = arith.cmpi sge, %37, %44 : vector<1x1xi32>
    %c-1_i32_8 = arith.constant -1 : i32
    %46 = vector.broadcast %c-1_i32_8 : i32 to vector<1x1xi32>
    %47 = arith.select %45, %43, %46 : vector<1x1xi1>, vector<1x1xi32>
    %c0_i32_9 = arith.constant 0 : i32
    %48 = vector.broadcast %c0_i32_9 : i32 to vector<1x128xi32>
    %49 = arith.cmpi eq, %0, %48 : vector<1x128xi32>
    %50 = vector.shape_cast %47 : vector<1x1xi32> to vector<1x1xi32>
    %51 = vector.broadcast %50 : vector<1x1xi32> to vector<1x128xi32>
    %52 = arith.select %49, %51, %35 : vector<1x128xi1>, vector<1x128xi32>
    %c-1_i32_10 = arith.constant -1 : i32
    %53 = vector.broadcast %c-1_i32_10 : i32 to vector<1x128xi32>
    %54 = arith.select %39, %53, %34 : vector<1x128xi1>, vector<1x128xi32>
    %cst_11 = arith.constant dense<-2147483648> : vector<1xi32>
    %55 = vector.multi_reduction <maxsi>, %54, %cst_11 [1] : vector<1x128xi32> to vector<1xi32>
    %56 = vector.shape_cast %55 : vector<1xi32> to vector<1x1xi32>
    %57 = vector.broadcast %56 : vector<1x1xi32> to vector<1x128xi32>
    %58 = arith.cmpi eq, %54, %57 : vector<1x128xi32>
    %c-2147483648_i32_12 = arith.constant -2147483648 : i32
    %59 = vector.broadcast %c-2147483648_i32_12 : i32 to vector<1x128xi32>
    %60 = arith.select %58, %1, %59 : vector<1x128xi1>, vector<1x128xi32>
    %cst_13 = arith.constant dense<-2147483648> : vector<1xi32>
    %61 = vector.multi_reduction <maxsi>, %60, %cst_13 [1] : vector<1x128xi32> to vector<1xi32>
    %62 = vector.shape_cast %61 : vector<1xi32> to vector<1x1xi32>
    %c0_i32_14 = arith.constant 0 : i32
    %63 = vector.broadcast %c0_i32_14 : i32 to vector<1x1xi32>
    %64 = arith.cmpi sge, %56, %63 : vector<1x1xi32>
    %c-1_i32_15 = arith.constant -1 : i32
    %65 = vector.broadcast %c-1_i32_15 : i32 to vector<1x1xi32>
    %66 = arith.select %64, %62, %65 : vector<1x1xi1>, vector<1x1xi32>
    %c1_i32_16 = arith.constant 1 : i32
    %67 = vector.broadcast %c1_i32_16 : i32 to vector<1x128xi32>
    %68 = arith.cmpi eq, %0, %67 : vector<1x128xi32>
    %69 = vector.shape_cast %66 : vector<1x1xi32> to vector<1x1xi32>
    %70 = vector.broadcast %69 : vector<1x1xi32> to vector<1x128xi32>
    %71 = arith.select %68, %70, %52 : vector<1x128xi1>, vector<1x128xi32>
    %c-1_i32_17 = arith.constant -1 : i32
    %72 = vector.broadcast %c-1_i32_17 : i32 to vector<1x128xi32>
    %73 = arith.select %58, %72, %54 : vector<1x128xi1>, vector<1x128xi32>
    %cst_18 = arith.constant dense<-2147483648> : vector<1xi32>
    %74 = vector.multi_reduction <maxsi>, %73, %cst_18 [1] : vector<1x128xi32> to vector<1xi32>
    %75 = vector.shape_cast %74 : vector<1xi32> to vector<1x1xi32>
    %76 = vector.broadcast %75 : vector<1x1xi32> to vector<1x128xi32>
    %77 = arith.cmpi eq, %73, %76 : vector<1x128xi32>
    %c-2147483648_i32_19 = arith.constant -2147483648 : i32
    %78 = vector.broadcast %c-2147483648_i32_19 : i32 to vector<1x128xi32>
    %79 = arith.select %77, %1, %78 : vector<1x128xi1>, vector<1x128xi32>
    %cst_20 = arith.constant dense<-2147483648> : vector<1xi32>
    %80 = vector.multi_reduction <maxsi>, %79, %cst_20 [1] : vector<1x128xi32> to vector<1xi32>
    %81 = vector.shape_cast %80 : vector<1xi32> to vector<1x1xi32>
    %c0_i32_21 = arith.constant 0 : i32
    %82 = vector.broadcast %c0_i32_21 : i32 to vector<1x1xi32>
    %83 = arith.cmpi sge, %75, %82 : vector<1x1xi32>
    %c-1_i32_22 = arith.constant -1 : i32
    %84 = vector.broadcast %c-1_i32_22 : i32 to vector<1x1xi32>
    %85 = arith.select %83, %81, %84 : vector<1x1xi1>, vector<1x1xi32>
    %c2_i32 = arith.constant 2 : i32
    %86 = vector.broadcast %c2_i32 : i32 to vector<1x128xi32>
    %87 = arith.cmpi eq, %0, %86 : vector<1x128xi32>
    %88 = vector.shape_cast %85 : vector<1x1xi32> to vector<1x1xi32>
    %89 = vector.broadcast %88 : vector<1x1xi32> to vector<1x128xi32>
    %90 = arith.select %87, %89, %71 : vector<1x128xi1>, vector<1x128xi32>
    %c-1_i32_23 = arith.constant -1 : i32
    %91 = vector.broadcast %c-1_i32_23 : i32 to vector<1x128xi32>
    %92 = arith.select %77, %91, %73 : vector<1x128xi1>, vector<1x128xi32>
    %cst_24 = arith.constant dense<-2147483648> : vector<1xi32>
    %93 = vector.multi_reduction <maxsi>, %92, %cst_24 [1] : vector<1x128xi32> to vector<1xi32>
    %94 = vector.shape_cast %93 : vector<1xi32> to vector<1x1xi32>
    %95 = vector.broadcast %94 : vector<1x1xi32> to vector<1x128xi32>
    %96 = arith.cmpi eq, %92, %95 : vector<1x128xi32>
    %c-2147483648_i32_25 = arith.constant -2147483648 : i32
    %97 = vector.broadcast %c-2147483648_i32_25 : i32 to vector<1x128xi32>
    %98 = arith.select %96, %1, %97 : vector<1x128xi1>, vector<1x128xi32>
    %cst_26 = arith.constant dense<-2147483648> : vector<1xi32>
    %99 = vector.multi_reduction <maxsi>, %98, %cst_26 [1] : vector<1x128xi32> to vector<1xi32>
    %100 = vector.shape_cast %99 : vector<1xi32> to vector<1x1xi32>
    %c0_i32_27 = arith.constant 0 : i32
    %101 = vector.broadcast %c0_i32_27 : i32 to vector<1x1xi32>
    %102 = arith.cmpi sge, %94, %101 : vector<1x1xi32>
    %c-1_i32_28 = arith.constant -1 : i32
    %103 = vector.broadcast %c-1_i32_28 : i32 to vector<1x1xi32>
    %104 = arith.select %102, %100, %103 : vector<1x1xi1>, vector<1x1xi32>
    %c3_i32 = arith.constant 3 : i32
    %105 = vector.broadcast %c3_i32 : i32 to vector<1x128xi32>
    %106 = arith.cmpi eq, %0, %105 : vector<1x128xi32>
    %107 = vector.shape_cast %104 : vector<1x1xi32> to vector<1x1xi32>
    %108 = vector.broadcast %107 : vector<1x1xi32> to vector<1x128xi32>
    %109 = arith.select %106, %108, %90 : vector<1x128xi1>, vector<1x128xi32>
    %c-1_i32_29 = arith.constant -1 : i32
    %110 = vector.broadcast %c-1_i32_29 : i32 to vector<1x128xi32>
    %111 = arith.select %96, %110, %92 : vector<1x128xi1>, vector<1x128xi32>
    %cst_30 = arith.constant dense<-2147483648> : vector<1xi32>
    %112 = vector.multi_reduction <maxsi>, %111, %cst_30 [1] : vector<1x128xi32> to vector<1xi32>
    %113 = vector.shape_cast %112 : vector<1xi32> to vector<1x1xi32>
    %114 = vector.broadcast %113 : vector<1x1xi32> to vector<1x128xi32>
    %115 = arith.cmpi eq, %111, %114 : vector<1x128xi32>
    %c-2147483648_i32_31 = arith.constant -2147483648 : i32
    %116 = vector.broadcast %c-2147483648_i32_31 : i32 to vector<1x128xi32>
    %117 = arith.select %115, %1, %116 : vector<1x128xi1>, vector<1x128xi32>
    %cst_32 = arith.constant dense<-2147483648> : vector<1xi32>
    %118 = vector.multi_reduction <maxsi>, %117, %cst_32 [1] : vector<1x128xi32> to vector<1xi32>
    %119 = vector.shape_cast %118 : vector<1xi32> to vector<1x1xi32>
    %c0_i32_33 = arith.constant 0 : i32
    %120 = vector.broadcast %c0_i32_33 : i32 to vector<1x1xi32>
    %121 = arith.cmpi sge, %113, %120 : vector<1x1xi32>
    %c-1_i32_34 = arith.constant -1 : i32
    %122 = vector.broadcast %c-1_i32_34 : i32 to vector<1x1xi32>
    %123 = arith.select %121, %119, %122 : vector<1x1xi1>, vector<1x1xi32>
    %c4_i32 = arith.constant 4 : i32
    %124 = vector.broadcast %c4_i32 : i32 to vector<1x128xi32>
    %125 = arith.cmpi eq, %0, %124 : vector<1x128xi32>
    %126 = vector.shape_cast %123 : vector<1x1xi32> to vector<1x1xi32>
    %127 = vector.broadcast %126 : vector<1x1xi32> to vector<1x128xi32>
    %128 = arith.select %125, %127, %109 : vector<1x128xi1>, vector<1x128xi32>
    %c-1_i32_35 = arith.constant -1 : i32
    %129 = vector.broadcast %c-1_i32_35 : i32 to vector<1x128xi32>
    %130 = arith.select %115, %129, %111 : vector<1x128xi1>, vector<1x128xi32>
    %cst_36 = arith.constant dense<-2147483648> : vector<1xi32>
    %131 = vector.multi_reduction <maxsi>, %130, %cst_36 [1] : vector<1x128xi32> to vector<1xi32>
    %132 = vector.shape_cast %131 : vector<1xi32> to vector<1x1xi32>
    %133 = vector.broadcast %132 : vector<1x1xi32> to vector<1x128xi32>
    %134 = arith.cmpi eq, %130, %133 : vector<1x128xi32>
    %c-2147483648_i32_37 = arith.constant -2147483648 : i32
    %135 = vector.broadcast %c-2147483648_i32_37 : i32 to vector<1x128xi32>
    %136 = arith.select %134, %1, %135 : vector<1x128xi1>, vector<1x128xi32>
    %cst_38 = arith.constant dense<-2147483648> : vector<1xi32>
    %137 = vector.multi_reduction <maxsi>, %136, %cst_38 [1] : vector<1x128xi32> to vector<1xi32>
    %138 = vector.shape_cast %137 : vector<1xi32> to vector<1x1xi32>
    %c0_i32_39 = arith.constant 0 : i32
    %139 = vector.broadcast %c0_i32_39 : i32 to vector<1x1xi32>
    %140 = arith.cmpi sge, %132, %139 : vector<1x1xi32>
    %c-1_i32_40 = arith.constant -1 : i32
    %141 = vector.broadcast %c-1_i32_40 : i32 to vector<1x1xi32>
    %142 = arith.select %140, %138, %141 : vector<1x1xi1>, vector<1x1xi32>
    %c5_i32 = arith.constant 5 : i32
    %143 = vector.broadcast %c5_i32 : i32 to vector<1x128xi32>
    %144 = arith.cmpi eq, %0, %143 : vector<1x128xi32>
    %145 = vector.shape_cast %142 : vector<1x1xi32> to vector<1x1xi32>
    %146 = vector.broadcast %145 : vector<1x1xi32> to vector<1x128xi32>
    %147 = arith.select %144, %146, %128 : vector<1x128xi1>, vector<1x128xi32>
    %c-1_i32_41 = arith.constant -1 : i32
    %148 = vector.broadcast %c-1_i32_41 : i32 to vector<1x128xi32>
    %149 = arith.select %134, %148, %130 : vector<1x128xi1>, vector<1x128xi32>
    %cst_42 = arith.constant dense<-2147483648> : vector<1xi32>
    %150 = vector.multi_reduction <maxsi>, %149, %cst_42 [1] : vector<1x128xi32> to vector<1xi32>
    %151 = vector.shape_cast %150 : vector<1xi32> to vector<1x1xi32>
    %152 = vector.broadcast %151 : vector<1x1xi32> to vector<1x128xi32>
    %153 = arith.cmpi eq, %149, %152 : vector<1x128xi32>
    %c-2147483648_i32_43 = arith.constant -2147483648 : i32
    %154 = vector.broadcast %c-2147483648_i32_43 : i32 to vector<1x128xi32>
    %155 = arith.select %153, %1, %154 : vector<1x128xi1>, vector<1x128xi32>
    %cst_44 = arith.constant dense<-2147483648> : vector<1xi32>
    %156 = vector.multi_reduction <maxsi>, %155, %cst_44 [1] : vector<1x128xi32> to vector<1xi32>
    %157 = vector.shape_cast %156 : vector<1xi32> to vector<1x1xi32>
    %c0_i32_45 = arith.constant 0 : i32
    %158 = vector.broadcast %c0_i32_45 : i32 to vector<1x1xi32>
    %159 = arith.cmpi sge, %151, %158 : vector<1x1xi32>
    %c-1_i32_46 = arith.constant -1 : i32
    %160 = vector.broadcast %c-1_i32_46 : i32 to vector<1x1xi32>
    %161 = arith.select %159, %157, %160 : vector<1x1xi1>, vector<1x1xi32>
    %c6_i32 = arith.constant 6 : i32
    %162 = vector.broadcast %c6_i32 : i32 to vector<1x128xi32>
    %163 = arith.cmpi eq, %0, %162 : vector<1x128xi32>
    %164 = vector.shape_cast %161 : vector<1x1xi32> to vector<1x1xi32>
    %165 = vector.broadcast %164 : vector<1x1xi32> to vector<1x128xi32>
    %166 = arith.select %163, %165, %147 : vector<1x128xi1>, vector<1x128xi32>
    %c-1_i32_47 = arith.constant -1 : i32
    %167 = vector.broadcast %c-1_i32_47 : i32 to vector<1x128xi32>
    %168 = arith.select %153, %167, %149 : vector<1x128xi1>, vector<1x128xi32>
    %cst_48 = arith.constant dense<-2147483648> : vector<1xi32>
    %169 = vector.multi_reduction <maxsi>, %168, %cst_48 [1] : vector<1x128xi32> to vector<1xi32>
    %170 = vector.shape_cast %169 : vector<1xi32> to vector<1x1xi32>
    %171 = vector.broadcast %170 : vector<1x1xi32> to vector<1x128xi32>
    %172 = arith.cmpi eq, %168, %171 : vector<1x128xi32>
    %c-2147483648_i32_49 = arith.constant -2147483648 : i32
    %173 = vector.broadcast %c-2147483648_i32_49 : i32 to vector<1x128xi32>
    %174 = arith.select %172, %1, %173 : vector<1x128xi1>, vector<1x128xi32>
    %cst_50 = arith.constant dense<-2147483648> : vector<1xi32>
    %175 = vector.multi_reduction <maxsi>, %174, %cst_50 [1] : vector<1x128xi32> to vector<1xi32>
    %176 = vector.shape_cast %175 : vector<1xi32> to vector<1x1xi32>
    %c0_i32_51 = arith.constant 0 : i32
    %177 = vector.broadcast %c0_i32_51 : i32 to vector<1x1xi32>
    %178 = arith.cmpi sge, %170, %177 : vector<1x1xi32>
    %c-1_i32_52 = arith.constant -1 : i32
    %179 = vector.broadcast %c-1_i32_52 : i32 to vector<1x1xi32>
    %180 = arith.select %178, %176, %179 : vector<1x1xi1>, vector<1x1xi32>
    %c7_i32_53 = arith.constant 7 : i32
    %181 = vector.broadcast %c7_i32_53 : i32 to vector<1x128xi32>
    %182 = arith.cmpi eq, %0, %181 : vector<1x128xi32>
    %183 = vector.shape_cast %180 : vector<1x1xi32> to vector<1x1xi32>
    %184 = vector.broadcast %183 : vector<1x1xi32> to vector<1x128xi32>
    %185 = arith.select %182, %184, %166 : vector<1x128xi1>, vector<1x128xi32>
    %c-1_i32_54 = arith.constant -1 : i32
    %186 = vector.broadcast %c-1_i32_54 : i32 to vector<1x128xi32>
    %187 = arith.select %172, %186, %168 : vector<1x128xi1>, vector<1x128xi32>
    %cst_55 = arith.constant dense<-2147483648> : vector<1xi32>
    %188 = vector.multi_reduction <maxsi>, %187, %cst_55 [1] : vector<1x128xi32> to vector<1xi32>
    %189 = vector.shape_cast %188 : vector<1xi32> to vector<1x1xi32>
    %190 = vector.broadcast %189 : vector<1x1xi32> to vector<1x128xi32>
    %191 = arith.cmpi eq, %187, %190 : vector<1x128xi32>
    %c-2147483648_i32_56 = arith.constant -2147483648 : i32
    %192 = vector.broadcast %c-2147483648_i32_56 : i32 to vector<1x128xi32>
    %193 = arith.select %191, %1, %192 : vector<1x128xi1>, vector<1x128xi32>
    %cst_57 = arith.constant dense<-2147483648> : vector<1xi32>
    %194 = vector.multi_reduction <maxsi>, %193, %cst_57 [1] : vector<1x128xi32> to vector<1xi32>
    %195 = vector.shape_cast %194 : vector<1xi32> to vector<1x1xi32>
    %c0_i32_58 = arith.constant 0 : i32
    %196 = vector.broadcast %c0_i32_58 : i32 to vector<1x1xi32>
    %197 = arith.cmpi sge, %189, %196 : vector<1x1xi32>
    %c-1_i32_59 = arith.constant -1 : i32
    %198 = vector.broadcast %c-1_i32_59 : i32 to vector<1x1xi32>
    %199 = arith.select %197, %195, %198 : vector<1x1xi1>, vector<1x1xi32>
    %c8_i32_60 = arith.constant 8 : i32
    %200 = vector.broadcast %c8_i32_60 : i32 to vector<1x128xi32>
    %201 = arith.cmpi eq, %0, %200 : vector<1x128xi32>
    %202 = vector.shape_cast %199 : vector<1x1xi32> to vector<1x1xi32>
    %203 = vector.broadcast %202 : vector<1x1xi32> to vector<1x128xi32>
    %204 = arith.select %201, %203, %185 : vector<1x128xi1>, vector<1x128xi32>
    %c-1_i32_61 = arith.constant -1 : i32
    %205 = vector.broadcast %c-1_i32_61 : i32 to vector<1x128xi32>
    %206 = arith.select %191, %205, %187 : vector<1x128xi1>, vector<1x128xi32>
    %cst_62 = arith.constant dense<-2147483648> : vector<1xi32>
    %207 = vector.multi_reduction <maxsi>, %206, %cst_62 [1] : vector<1x128xi32> to vector<1xi32>
    %208 = vector.shape_cast %207 : vector<1xi32> to vector<1x1xi32>
    %209 = vector.broadcast %208 : vector<1x1xi32> to vector<1x128xi32>
    %210 = arith.cmpi eq, %206, %209 : vector<1x128xi32>
    %c-2147483648_i32_63 = arith.constant -2147483648 : i32
    %211 = vector.broadcast %c-2147483648_i32_63 : i32 to vector<1x128xi32>
    %212 = arith.select %210, %1, %211 : vector<1x128xi1>, vector<1x128xi32>
    %cst_64 = arith.constant dense<-2147483648> : vector<1xi32>
    %213 = vector.multi_reduction <maxsi>, %212, %cst_64 [1] : vector<1x128xi32> to vector<1xi32>
    %214 = vector.shape_cast %213 : vector<1xi32> to vector<1x1xi32>
    %c0_i32_65 = arith.constant 0 : i32
    %215 = vector.broadcast %c0_i32_65 : i32 to vector<1x1xi32>
    %216 = arith.cmpi sge, %208, %215 : vector<1x1xi32>
    %c-1_i32_66 = arith.constant -1 : i32
    %217 = vector.broadcast %c-1_i32_66 : i32 to vector<1x1xi32>
    %218 = arith.select %216, %214, %217 : vector<1x1xi1>, vector<1x1xi32>
    %c9_i32 = arith.constant 9 : i32
    %219 = vector.broadcast %c9_i32 : i32 to vector<1x128xi32>
    %220 = arith.cmpi eq, %0, %219 : vector<1x128xi32>
    %221 = vector.shape_cast %218 : vector<1x1xi32> to vector<1x1xi32>
    %222 = vector.broadcast %221 : vector<1x1xi32> to vector<1x128xi32>
    %223 = arith.select %220, %222, %204 : vector<1x128xi1>, vector<1x128xi32>
    %c0_67 = arith.constant 0 : index
    %c0_68 = arith.constant 0 : index
    %224 = vector.load %arg2[%c0_67, %c0_68] : memref<1x128xi32, #tpu.memory_space<vmem>>, vector<1x128xi32>
    tpu.vector_store %arg2[%c0_67, %c0_68], %223 {strides = array<i32>} : memref<1x128xi32, #tpu.memory_space<vmem>>, vector<1x128xi32>,
    return
  }
}

</mosaic_0001>

<llo_original>
// kernel: signup_forward.1
$region0: #{signup_forward.1}
  #allocation0 [shape = 'u32[]', space=smem, size = 0x4, offset = 0x4, fixed_abs, tag = 'smem constant byte address 0x4 - core index']
  #allocation1 [shape = 'u32[72,128]{1,0:T(1,128)}', space=vmem, size = 0x9000, scoped, tag = 'internal scratch']
  #allocation2 [shape = 's32[1]{0:T(128)S(6)}', space=smem, size = 0x200, scoped, tag = 'scoped memory for signup_forward.1']
  %s0 = inlined_call_operand.<no memory space> [shape: s32[1], index: 0, kind: input, shape index: {}]
  %s1 = inlined_call_operand.hbm [shape: s32[8,128], index: 1, kind: input, shape index: {}]
  %s2 = inlined_call_operand.vmem [shape: s32[1,128], index: 2, kind: output, shape index: {}]
  %s3 = sld [smem:[#allocation0]]
  $region22: #{signup_forward.1} parent=0
    _
  %s5 = ssub.s32 1, %s3
  %s6 = scalar_select 0, %s5, %s3
  %7 = sst [smem:[#allocation2]] %s0
  $region1: #{signup_forward.1} parent=0
    #allocation3 [shape = 'u8[4096]{0}', space=vmem, size = 0x1000, scoped, tag = 'input window, operand 1, single buffered']
    #allocation4 [shape = 's32[1]{0}', space=sflag, size = 0x4, scoped, tag = 'scoped memory for signup_forward.1']
    %8 = vsyncpa [#allocation4], 0
    // Predicated region
    $region2: #{signup_forward.1} parent=1 // pred_check
      _
    $region3: #{signup_forward.1} parent=1 // pred_check_branch
      %10 = sbr.rel (0) target = $region5
    $region4: #{signup_forward.1} parent=1 // pred_region
      _
    $region5: #{signup_forward.1} parent=1 // pred_fallthru
      _
    // Predicated region
    $region6: #{signup_forward.1} parent=1 // pred_check
      _
    $region7: #{signup_forward.1} parent=1 // pred_check_branch
      %12 = sbr.rel (0) target = $region9
    $region8: #{signup_forward.1} parent=1 // pred_region
      %14 = vsyncadd [#allocation4], 0
      %s16 = sshll.u32 %s1, 4
      %s17 = int_to_ptr.hbm [resolvable:$true] %s16
      %s18 = sshll.u32 [#allocation3], 4
      %s19 = int_to_ptr.vmem [resolvable:$true] %s18
      %21 = dma.hbm_to_vmem [thread:$0]  %s17, 128, %s19, [#allocation4]
    $region9: #{signup_forward.1} parent=1 // pred_fallthru
      _
    // Predicated region
    $region10: #{signup_forward.1} parent=1 // pred_check
      _
    $region11: #{signup_forward.1} parent=1 // pred_check_branch
      %23 = sbr.rel (0) target = $region13
    $region12: #{signup_forward.1} parent=1 // pred_region
      %25 = dma.done [#allocation4], 128
    $region13: #{signup_forward.1} parent=1 // pred_fallthru
      _
    %v26 = vlaneseq
    %v27 = vand.u32 %v26, 127
    %v28 = vld [vmem:[#allocation3] sm:$0x1]
    %v29 = vld [vmem:[#allocation3 + $0x1] sm:$0x1]
    %v30 = vld [vmem:[#allocation3 + $0x2] sm:$0x1]
    %v31 = vmul.u32 %v27, 2654435761
    %s32 = sld [smem:[#allocation2]]
    %s33 = smul.u32 %s32, 2246822519
    %v34 = vstv %s33
    %v35 = vadd.s32 %v31, %v34
    %v36 = vshrl.u32 %v35, 16
    %v37 = vxor.u32 %v35, %v36
    %v38 = vmul.u32 %v37, 2146121005
    %v39 = vshrl.u32 %v38, 15
    %v40 = vxor.u32 %v38, %v39
    %v41 = vmul.u32 %v40, 2221713035
    %v42 = vshrl.u32 %v41, 16
    %v43 = vxor.u32 %v41, %v42
    %v44 = vshrl.u32 %v43, 8
    %vm45 = vcmp.eq.s32.totalorder %v29, 1
    %vm46 = vcmp.eq.s32.totalorder %v30, 0
    %vm47 = vmand %vm45, %vm46
    %v48 = vshll.u32 %v44, 7
    %v49 = vor.u32 %v48, %v27
    %v50 = vsel %vm47, %v49, 4294967295
    %vm51 = vcmask 1040384
    %v52 = vsel %vm51, %v50, 2147483648
    %v53 = vand.u32 %v52, 65535
    %v54 = vshra.s32 %v52, 16
    %v55 = vcvt.s32.f32 %v53
    %v56 = vcvt.s32.f32 %v54
    %57 = vmax.xlane.f32.xlu0 %v56
    %v58 = vpop.xlane.xlu0 %57
    %vm59 = vcmp.eq.f32.partialorder %v56, %v58
    %v60 = vsel %vm59, %v55, -inf
    %61 = vmax.xlane.f32.xlu0 %v60
    %v62 = vpop.xlane.xlu0 %61
    %v63 = vcvt.f32.s32 %v62
    %v64 = vcvt.f32.s32 %v58
    %v65 = vshll.u32 %v64, 16
    %v66 = vadd.s32 %v65, %v63
    %vm67 = vcmp.eq.s32.totalorder %v50, %v66
    %v68 = vsel %vm67, %v28, 2147483648
    %v69 = vsel %vm51, %v68, 2147483648
    %v70 = vand.u32 %v69, 65535
    %v71 = vshra.s32 %v69, 16
    %v72 = vcvt.s32.f32 %v70
    %v73 = vcvt.s32.f32 %v71
    %74 = vmax.xlane.f32.xlu0 %v73
    %v75 = vpop.xlane.xlu0 %74
    %vm76 = vcmp.eq.f32.partialorder %v73, %v75
    %v77 = vsel %vm76, %v72, -inf
    %78 = vmax.xlane.f32.xlu0 %v77
    %v79 = vpop.xlane.xlu0 %78
    %v80 = vcvt.f32.s32 %v79
    %v81 = vcvt.f32.s32 %v75
    %v82 = vshll.u32 %v81, 16
    %v83 = vadd.s32 %v82, %v80
    %vm84 = vcmp.ge.s32.totalorder %v66, 0
    %v85 = vsel %vm84, %v83, 4294967295
    %vm86 = vcmp.eq.s32.totalorder %v27, 0
    %v87 = vsel %vm86, %v85, 4294967295
    %v88 = vsel %vm67, 4294967295, %v50
    %v89 = vsel %vm51, %v88, 2147483648
    %v90 = vand.u32 %v89, 65535
    %v91 = vshra.s32 %v89, 16
    %v92 = vcvt.s32.f32 %v90
    %v93 = vcvt.s32.f32 %v91
    %94 = vmax.xlane.f32.xlu0 %v93
    %v95 = vpop.xlane.xlu0 %94
    %vm96 = vcmp.eq.f32.partialorder %v93, %v95
    %v97 = vsel %vm96, %v92, -inf
    %98 = vmax.xlane.f32.xlu0 %v97
    %v99 = vpop.xlane.xlu0 %98
    %v100 = vcvt.f32.s32 %v99
    %v101 = vcvt.f32.s32 %v95
    %v102 = vshll.u32 %v101, 16
    %v103 = vadd.s32 %v102, %v100
    %vm104 = vcmp.eq.s32.totalorder %v88, %v103
    %v105 = vsel %vm104, %v28, 2147483648
    %v106 = vsel %vm51, %v105, 2147483648
    %v107 = vand.u32 %v106, 65535
    %v108 = vshra.s32 %v106, 16
    %v109 = vcvt.s32.f32 %v107
    %v110 = vcvt.s32.f32 %v108
    %111 = vmax.xlane.f32.xlu0 %v110
    %v112 = vpop.xlane.xlu0 %111
    %vm113 = vcmp.eq.f32.partialorder %v110, %v112
    %v114 = vsel %vm113, %v109, -inf
    %115 = vmax.xlane.f32.xlu0 %v114
    %v116 = vpop.xlane.xlu0 %115
    %v117 = vcvt.f32.s32 %v116
    %v118 = vcvt.f32.s32 %v112
    %v119 = vshll.u32 %v118, 16
    %v120 = vadd.s32 %v119, %v117
    %vm121 = vcmp.ge.s32.totalorder %v103, 0
    %v122 = vsel %vm121, %v120, 4294967295
    %vm123 = vcmp.eq.s32.totalorder %v27, 1
    %v124 = vsel %vm123, %v122, %v87
    %v125 = vsel %vm104, 4294967295, %v88
    %v126 = vsel %vm51, %v125, 2147483648
    %v127 = vand.u32 %v126, 65535
    %v128 = vshra.s32 %v126, 16
    %v129 = vcvt.s32.f32 %v127
    %v130 = vcvt.s32.f32 %v128
    %131 = vmax.xlane.f32.xlu0 %v130
    %v132 = vpop.xlane.xlu0 %131
    %vm133 = vcmp.eq.f32.partialorder %v130, %v132
    %v134 = vsel %vm133, %v129, -inf
    %135 = vmax.xlane.f32.xlu0 %v134
    %v136 = vpop.xlane.xlu0 %135
    %v137 = vcvt.f32.s32 %v136
    %v138 = vcvt.f32.s32 %v132
    %v139 = vshll.u32 %v138, 16
    %v140 = vadd.s32 %v139, %v137
    %vm141 = vcmp.eq.s32.totalorder %v125, %v140
    %v142 = vsel %vm141, %v28, 2147483648
    %v143 = vsel %vm51, %v142, 2147483648
    %v144 = vand.u32 %v143, 65535
    %v145 = vshra.s32 %v143, 16
    %v146 = vcvt.s32.f32 %v144
    %v147 = vcvt.s32.f32 %v145
    %148 = vmax.xlane.f32.xlu0 %v147
    %v149 = vpop.xlane.xlu0 %148
    %vm150 = vcmp.eq.f32.partialorder %v147, %v149
    %v151 = vsel %vm150, %v146, -inf
    %152 = vmax.xlane.f32.xlu0 %v151
    %v153 = vpop.xlane.xlu0 %152
    %v154 = vcvt.f32.s32 %v153
    %v155 = vcvt.f32.s32 %v149
    %v156 = vshll.u32 %v155, 16
    %v157 = vadd.s32 %v156, %v154
    %vm158 = vcmp.ge.s32.totalorder %v140, 0
    %v159 = vsel %vm158, %v157, 4294967295
    %vm160 = vcmp.eq.s32.totalorder %v27, 2
    %v161 = vsel %vm160, %v159, %v124
    %v162 = vsel %vm141, 4294967295, %v125
    %v163 = vsel %vm51, %v162, 2147483648
    %v164 = vand.u32 %v163, 65535
    %v165 = vshra.s32 %v163, 16
    %v166 = vcvt.s32.f32 %v164
    %v167 = vcvt.s32.f32 %v165
    %168 = vmax.xlane.f32.xlu0 %v167
    %v169 = vpop.xlane.xlu0 %168
    %vm170 = vcmp.eq.f32.partialorder %v167, %v169
    %v171 = vsel %vm170, %v166, -inf
    %172 = vmax.xlane.f32.xlu0 %v171
    %v173 = vpop.xlane.xlu0 %172
    %v174 = vcvt.f32.s32 %v173
    %v175 = vcvt.f32.s32 %v169
    %v176 = vshll.u32 %v175, 16
    %v177 = vadd.s32 %v176, %v174
    %vm178 = vcmp.eq.s32.totalorder %v162, %v177
    %v179 = vsel %vm178, %v28, 2147483648
    %v180 = vsel %vm51, %v179, 2147483648
    %v181 = vand.u32 %v180, 65535
    %v182 = vshra.s32 %v180, 16
    %v183 = vcvt.s32.f32 %v181
    %v184 = vcvt.s32.f32 %v182
    %185 = vmax.xlane.f32.xlu0 %v184
    %v186 = vpop.xlane.xlu0 %185
    %vm187 = vcmp.eq.f32.partialorder %v184, %v186
    %v188 = vsel %vm187, %v183, -inf
    %189 = vmax.xlane.f32.xlu0 %v188
    %v190 = vpop.xlane.xlu0 %189
    %v191 = vcvt.f32.s32 %v190
    %v192 = vcvt.f32.s32 %v186
    %v193 = vshll.u32 %v192, 16
    %v194 = vadd.s32 %v193, %v191
    %vm195 = vcmp.ge.s32.totalorder %v177, 0
    %v196 = vsel %vm195, %v194, 4294967295
    %vm197 = vcmp.eq.s32.totalorder %v27, 3
    %v198 = vsel %vm197, %v196, %v161
    %v199 = vsel %vm178, 4294967295, %v162
    %v200 = vsel %vm51, %v199, 2147483648
    %v201 = vand.u32 %v200, 65535
    %v202 = vshra.s32 %v200, 16
    %v203 = vcvt.s32.f32 %v201
    %v204 = vcvt.s32.f32 %v202
    %205 = vmax.xlane.f32.xlu0 %v204
    %v206 = vpop.xlane.xlu0 %205
    %vm207 = vcmp.eq.f32.partialorder %v204, %v206
    %v208 = vsel %vm207, %v203, -inf
    %209 = vmax.xlane.f32.xlu0 %v208
    %v210 = vpop.xlane.xlu0 %209
    %v211 = vcvt.f32.s32 %v210
    %v212 = vcvt.f32.s32 %v206
    %v213 = vshll.u32 %v212, 16
    %v214 = vadd.s32 %v213, %v211
    %vm215 = vcmp.eq.s32.totalorder %v199, %v214
    %v216 = vsel %vm215, %v28, 2147483648
    %v217 = vsel %vm51, %v216, 2147483648
    %v218 = vand.u32 %v217, 65535
    %v219 = vshra.s32 %v217, 16
    %v220 = vcvt.s32.f32 %v218
    %v221 = vcvt.s32.f32 %v219
    %222 = vmax.xlane.f32.xlu0 %v221
    %v223 = vpop.xlane.xlu0 %222
    %vm224 = vcmp.eq.f32.partialorder %v221, %v223
    %v225 = vsel %vm224, %v220, -inf
    %226 = vmax.xlane.f32.xlu0 %v225
    %v227 = vpop.xlane.xlu0 %226
    %v228 = vcvt.f32.s32 %v227
    %v229 = vcvt.f32.s32 %v223
    %v230 = vshll.u32 %v229, 16
    %v231 = vadd.s32 %v230, %v228
    %vm232 = vcmp.ge.s32.totalorder %v214, 0
    %v233 = vsel %vm232, %v231, 4294967295
    %vm234 = vcmp.eq.s32.totalorder %v27, 4
    %v235 = vsel %vm234, %v233, %v198
    %v236 = vsel %vm215, 4294967295, %v199
    %v237 = vsel %vm51, %v236, 2147483648
    %v238 = vand.u32 %v237, 65535
    %v239 = vshra.s32 %v237, 16
    %v240 = vcvt.s32.f32 %v238
    %v241 = vcvt.s32.f32 %v239
    %242 = vmax.xlane.f32.xlu0 %v241
    %v243 = vpop.xlane.xlu0 %242
    %vm244 = vcmp.eq.f32.partialorder %v241, %v243
    %v245 = vsel %vm244, %v240, -inf
    %246 = vmax.xlane.f32.xlu0 %v245
    %v247 = vpop.xlane.xlu0 %246
    %v248 = vcvt.f32.s32 %v247
    %v249 = vcvt.f32.s32 %v243
    %v250 = vshll.u32 %v249, 16
    %v251 = vadd.s32 %v250, %v248
    %vm252 = vcmp.eq.s32.totalorder %v236, %v251
    %v253 = vsel %vm252, %v28, 2147483648
    %v254 = vsel %vm51, %v253, 2147483648
    %v255 = vand.u32 %v254, 65535
    %v256 = vshra.s32 %v254, 16
    %v257 = vcvt.s32.f32 %v255
    %v258 = vcvt.s32.f32 %v256
    %259 = vmax.xlane.f32.xlu0 %v258
    %v260 = vpop.xlane.xlu0 %259
    %vm261 = vcmp.eq.f32.partialorder %v258, %v260
    %v262 = vsel %vm261, %v257, -inf
    %263 = vmax.xlane.f32.xlu0 %v262
    %v264 = vpop.xlane.xlu0 %263
    %v265 = vcvt.f32.s32 %v264
    %v266 = vcvt.f32.s32 %v260
    %v267 = vshll.u32 %v266, 16
    %v268 = vadd.s32 %v267, %v265
    %vm269 = vcmp.ge.s32.totalorder %v251, 0
    %v270 = vsel %vm269, %v268, 4294967295
    %vm271 = vcmp.eq.s32.totalorder %v27, 5
    %v272 = vsel %vm271, %v270, %v235
    %v273 = vsel %vm252, 4294967295, %v236
    %v274 = vsel %vm51, %v273, 2147483648
    %v275 = vand.u32 %v274, 65535
    %v276 = vshra.s32 %v274, 16
    %v277 = vcvt.s32.f32 %v275
    %v278 = vcvt.s32.f32 %v276
    %279 = vmax.xlane.f32.xlu0 %v278
    %v280 = vpop.xlane.xlu0 %279
    %vm281 = vcmp.eq.f32.partialorder %v278, %v280
    %v282 = vsel %vm281, %v277, -inf
    %283 = vmax.xlane.f32.xlu0 %v282
    %v284 = vpop.xlane.xlu0 %283
    %v285 = vcvt.f32.s32 %v284
    %v286 = vcvt.f32.s32 %v280
    %v287 = vshll.u32 %v286, 16
    %v288 = vadd.s32 %v287, %v285
    %vm289 = vcmp.eq.s32.totalorder %v273, %v288
    %v290 = vsel %vm289, %v28, 2147483648
    %v291 = vsel %vm51, %v290, 2147483648
    %v292 = vand.u32 %v291, 65535
    %v293 = vshra.s32 %v291, 16
    %v294 = vcvt.s32.f32 %v292
    %v295 = vcvt.s32.f32 %v293
    %296 = vmax.xlane.f32.xlu0 %v295
    %v297 = vpop.xlane.xlu0 %296
    %vm298 = vcmp.eq.f32.partialorder %v295, %v297
    %v299 = vsel %vm298, %v294, -inf
    %300 = vmax.xlane.f32.xlu0 %v299
    %v301 = vpop.xlane.xlu0 %300
    %v302 = vcvt.f32.s32 %v301
    %v303 = vcvt.f32.s32 %v297
    %v304 = vshll.u32 %v303, 16
    %v305 = vadd.s32 %v304, %v302
    %vm306 = vcmp.ge.s32.totalorder %v288, 0
    %v307 = vsel %vm306, %v305, 4294967295
    %vm308 = vcmp.eq.s32.totalorder %v27, 6
    %v309 = vsel %vm308, %v307, %v272
    %v310 = vsel %vm289, 4294967295, %v273
    %v311 = vsel %vm51, %v310, 2147483648
    %v312 = vand.u32 %v311, 65535
    %v313 = vshra.s32 %v311, 16
    %v314 = vcvt.s32.f32 %v312
    %v315 = vcvt.s32.f32 %v313
    %316 = vmax.xlane.f32.xlu0 %v315
    %v317 = vpop.xlane.xlu0 %316
    %vm318 = vcmp.eq.f32.partialorder %v315, %v317
    %v319 = vsel %vm318, %v314, -inf
    %320 = vmax.xlane.f32.xlu0 %v319
    %v321 = vpop.xlane.xlu0 %320
    %v322 = vcvt.f32.s32 %v321
    %v323 = vcvt.f32.s32 %v317
    %v324 = vshll.u32 %v323, 16
    %v325 = vadd.s32 %v324, %v322
    %vm326 = vcmp.eq.s32.totalorder %v310, %v325
    %v327 = vsel %vm326, %v28, 2147483648
    %v328 = vsel %vm51, %v327, 2147483648
    %v329 = vand.u32 %v328, 65535
    %v330 = vshra.s32 %v328, 16
    %v331 = vcvt.s32.f32 %v329
    %v332 = vcvt.s32.f32 %v330
    %333 = vmax.xlane.f32.xlu0 %v332
    %v334 = vpop.xlane.xlu0 %333
    %vm335 = vcmp.eq.f32.partialorder %v332, %v334
    %v336 = vsel %vm335, %v331, -inf
    %337 = vmax.xlane.f32.xlu0 %v336
    %v338 = vpop.xlane.xlu0 %337
    %v339 = vcvt.f32.s32 %v338
    %v340 = vcvt.f32.s32 %v334
    %v341 = vshll.u32 %v340, 16
    %v342 = vadd.s32 %v341, %v339
    %vm343 = vcmp.ge.s32.totalorder %v325, 0
    %v344 = vsel %vm343, %v342, 4294967295
    %vm345 = vcmp.eq.s32.totalorder %v27, 7
    %v346 = vsel %vm345, %v344, %v309
    %v347 = vsel %vm326, 4294967295, %v310
    %v348 = vsel %vm51, %v347, 2147483648
    %v349 = vand.u32 %v348, 65535
    %v350 = vshra.s32 %v348, 16
    %v351 = vcvt.s32.f32 %v349
    %v352 = vcvt.s32.f32 %v350
    %353 = vmax.xlane.f32.xlu0 %v352
    %v354 = vpop.xlane.xlu0 %353
    %vm355 = vcmp.eq.f32.partialorder %v352, %v354
    %v356 = vsel %vm355, %v351, -inf
    %357 = vmax.xlane.f32.xlu0 %v356
    %v358 = vpop.xlane.xlu0 %357
    %v359 = vcvt.f32.s32 %v358
    %v360 = vcvt.f32.s32 %v354
    %v361 = vshll.u32 %v360, 16
    %v362 = vadd.s32 %v361, %v359
    %vm363 = vcmp.eq.s32.totalorder %v347, %v362
    %v364 = vsel %vm363, %v28, 2147483648
    %v365 = vsel %vm51, %v364, 2147483648
    %v366 = vand.u32 %v365, 65535
    %v367 = vshra.s32 %v365, 16
    %v368 = vcvt.s32.f32 %v366
    %v369 = vcvt.s32.f32 %v367
    %370 = vmax.xlane.f32.xlu0 %v369
    %v371 = vpop.xlane.xlu0 %370
    %vm372 = vcmp.eq.f32.partialorder %v369, %v371
    %v373 = vsel %vm372, %v368, -inf
    %374 = vmax.xlane.f32.xlu0 %v373
    %v375 = vpop.xlane.xlu0 %374
    %v376 = vcvt.f32.s32 %v375
    %v377 = vcvt.f32.s32 %v371
    %v378 = vshll.u32 %v377, 16
    %v379 = vadd.s32 %v378, %v376
    %vm380 = vcmp.ge.s32.totalorder %v362, 0
    %v381 = vsel %vm380, %v379, 4294967295
    %vm382 = vcmp.eq.s32.totalorder %v27, 8
    %v383 = vsel %vm382, %v381, %v346
    %v384 = vsel %vm363, 4294967295, %v347
    %v385 = vsel %vm51, %v384, 2147483648
    %v386 = vand.u32 %v385, 65535
    %v387 = vshra.s32 %v385, 16
    %v388 = vcvt.s32.f32 %v386
    %v389 = vcvt.s32.f32 %v387
    %390 = vmax.xlane.f32.xlu0 %v389
    %v391 = vpop.xlane.xlu0 %390
    %vm392 = vcmp.eq.f32.partialorder %v389, %v391
    %v393 = vsel %vm392, %v388, -inf
    %394 = vmax.xlane.f32.xlu0 %v393
    %v395 = vpop.xlane.xlu0 %394
    %v396 = vcvt.f32.s32 %v395
    %v397 = vcvt.f32.s32 %v391
    %v398 = vshll.u32 %v397, 16
    %v399 = vadd.s32 %v398, %v396
    %vm400 = vcmp.eq.s32.totalorder %v384, %v399
    %v401 = vsel %vm400, %v28, 2147483648
    %v402 = vsel %vm51, %v401, 2147483648
    %v403 = vand.u32 %v402, 65535
    %v404 = vshra.s32 %v402, 16
    %v405 = vcvt.s32.f32 %v403
    %v406 = vcvt.s32.f32 %v404
    %407 = vmax.xlane.f32.xlu0 %v406
    %v408 = vpop.xlane.xlu0 %407
    %vm409 = vcmp.eq.f32.partialorder %v406, %v408
    %v410 = vsel %vm409, %v405, -inf
    %411 = vmax.xlane.f32.xlu0 %v410
    %v412 = vpop.xlane.xlu0 %411
    %v413 = vcvt.f32.s32 %v412
    %v414 = vcvt.f32.s32 %v408
    %v415 = vshll.u32 %v414, 16
    %v416 = vadd.s32 %v415, %v413
    %vm417 = vcmp.ge.s32.totalorder %v399, 0
    %v418 = vsel %vm417, %v416, 4294967295
    %vm419 = vcmp.eq.s32.totalorder %v27, 9
    %v420 = vsel %vm419, %v418, %v383
    %421 = vst [vmem:[%s2] sm:$0x1] %v420
    // Predicated region
    $region14: #{signup_forward.1} parent=1 // pred_check
      _
    $region15: #{signup_forward.1} parent=1 // pred_check_branch
      %423 = sbr.rel (0) target = $region17
    $region16: #{signup_forward.1} parent=1 // pred_region
      _
    $region17: #{signup_forward.1} parent=1 // pred_fallthru
      _
    // Predicated region
    $region18: #{signup_forward.1} parent=1 // pred_check
      _
    $region19: #{signup_forward.1} parent=1 // pred_check_branch
      %425 = sbr.rel (0) target = $region21
    $region20: #{signup_forward.1} parent=1 // pred_region
      _
    $region21: #{signup_forward.1} parent=1 // pred_fallthru
      _
    %426 = vsyncpa [#allocation4], 1

</llo_original>
